<compile_context>
chip_gen: v7x
topology: tpu7x:2x2x1
jax: 0.10.0
libtpu: 0.0.40
codegen_flags: <defaults>
</compile_context>

<pallas_src>
import jax
import jax.numpy as jnp
from jax.experimental import pallas as pl
from jax.experimental.pallas import tpu as pltpu

D_IN, H1, H2, D_OUT = 9, 32, 16, 1
D_IN_PAD = 16                          # 9 features + 1 ones-row (bias) + 6 zero rows
SLAB_ROWS = H1 + H2                    # 48
B2_COL, W3_COL, B3_COL = H1, H1 + 1, H1 + 2   # 32, 33, 34
SLAB_COLS = H1 + 3                     # 35
# Packed param slab (bf16) layout:
#   rows 0:32,  cols 0:16 -> [W1^T (32,9) | b1 (col 9) | zeros (cols 10:16)]
#   rows 32:48, cols 0:32 -> W2^T (16,32)
#   rows 32:48, col 32    -> b2 (16,)
#   rows 32:48, col 33    -> w3 column (16,)
#   row  32,    col 34    -> b3 scalar


def mlp_kernel(xt_ref, p_ref, o_ref):
    xt = xt_ref[...]                                           # (16, TB) bf16, batch on lanes

    # layer 1 (MXU, bf16 in / f32 acc); b1 folded via ones-row in xt + bias column in W1.
    w1 = p_ref[0:H1, 0:D_IN_PAD]                               # (32, 16) bf16
    h1 = jnp.maximum(
        jnp.dot(w1, xt, preferred_element_type=jnp.float32), 0.0)           # (32, TB) f32

    # layer 2 (MXU, bf16 in / f32 acc) + f32 bias add + ReLU on the VPU.
    w2 = p_ref[H1:H1 + H2, 0:H1]                               # (16, 32) bf16
    b2 = p_ref[H1:H1 + H2, B2_COL:B2_COL + 1].astype(jnp.float32)           # (16, 1)
    h2 = jnp.maximum(
        jnp.dot(w2, h1.astype(jnp.bfloat16), preferred_element_type=jnp.float32) + b2,
        0.0)                                                   # (16, TB) f32

    # layer 3 (M=1): keep off the MXU -- broadcast-multiply + sublane reduce (VPU/XLU).
    w3c = p_ref[H1:H1 + H2, W3_COL:W3_COL + 1].astype(jnp.float32)          # (16, 1)
    b3 = p_ref[H1:H1 + 1, B3_COL:B3_COL + 1].astype(jnp.float32)            # (1, 1)
    h3 = jnp.maximum(jnp.sum(w3c * h2, axis=0, keepdims=True) + b3, 0.0)    # (1, TB)

    # exact sigmoid (exp on the EUP); lane-dense unmasked store of the whole row.
    o_ref[...] = (1.0 / (1.0 + jnp.exp(-h3))).astype(o_ref.dtype)


def _round_up(n, m):
    return ((n + m - 1) // m) * m


def pack_params(w1, b1, w2, b2, w3, b3):
    """Pack all weights/biases (given in (in, out) layout) into one bf16 (48, 35) slab.

    Call this ONCE per set of weights and reuse the slab across forward calls.
    """
    slab = jnp.zeros((SLAB_ROWS, SLAB_COLS), jnp.float32)
    slab = slab.at[0:H1, 0:D_IN].set(w1.T)
    slab = slab.at[0:H1, D_IN].set(b1)                 # bias column, matched by ones row in xt
    slab = slab.at[H1:H1 + H2, 0:H1].set(w2.T)
    slab = slab.at[H1:H1 + H2, B2_COL].set(b2)
    slab = slab.at[H1:H1 + H2, W3_COL].set(w3[:, 0])
    slab = slab.at[H1, B3_COL].set(b3[0])
    return slab.astype(jnp.bfloat16)


def _choose_tile(batch, tile_b):
    # Lane-dense tile (multiple of 128); ensure >=2 grid steps when the batch allows
    # it so the "parallel" grid axis can shard across both v7x TensorCores.
    half = _round_up(-(-batch // 2), 128)
    return max(128, min(tile_b, half))


def mlp_forward(x, slab, tile_b=8192):
    B = x.shape[0]
    tile_b = _choose_tile(B, tile_b)
    n_tiles = pl.cdiv(B, tile_b)
    b_pad = n_tiles * tile_b

    # Batch on lanes; cast to bf16 early so the transpose/pad pass moves half the bytes.
    xt = jnp.concatenate(
        [x.T.astype(jnp.bfloat16),
         jnp.ones((1, B), jnp.bfloat16),                          # ones row -> b1 via MXU
         jnp.zeros((D_IN_PAD - D_IN - 1, B), jnp.bfloat16)],
        axis=0)                                                   # (16, B)
    if b_pad != B:
        xt = jnp.pad(xt, ((0, 0), (0, b_pad - B)))                # pad only the tail tile

    out_t = pl.pallas_call(
        mlp_kernel,
        out_shape=jax.ShapeDtypeStruct((D_OUT, b_pad), jnp.float32),
        grid=(n_tiles,),
        in_specs=[
            pl.BlockSpec((D_IN_PAD, tile_b), lambda i: (0, i)),       # x tile, double-buffered
            pl.BlockSpec((SLAB_ROWS, SLAB_COLS), lambda i: (0, 0)),   # params, resident
        ],
        out_specs=pl.BlockSpec((D_OUT, tile_b), lambda i: (0, i)),
        compiler_params=pltpu.CompilerParams(
            dimension_semantics=("parallel",)),
    )(xt, slab)

    return out_t[0, :B].reshape(B, 1)


def init_params(key):
    # Deterministic init mimicking PyTorch nn.Linear (uniform in +/- 1/sqrt(fan_in)),
    # stored in (in, out) layout (pack_params transposes).
    dims = [(D_IN, H1), (H1, H2), (H2, D_OUT)]
    params = []
    for (fan_in, fan_out) in dims:
        key, kw, kb = jax.random.split(key, 3)
        bound = 1.0 / jnp.sqrt(fan_in)
        w = jax.random.uniform(kw, (fan_in, fan_out), jnp.float32, -bound, bound)
        b = jax.random.uniform(kb, (fan_out,), jnp.float32, -bound, bound)
        params.extend([w, b])
    return params


def reference_forward(x, w1, b1, w2, b2, w3, b3):
    h = jnp.maximum(x @ w1 + b1, 0.0)
    h = jnp.maximum(h @ w2 + b2, 0.0)
    h = jnp.maximum(h @ w3 + b3, 0.0)
    return jax.nn.sigmoid(h)


if __name__ == "__main__":
    key = jax.random.PRNGKey(0)
    key, kx = jax.random.split(key)
    B = 8
    x = jax.random.normal(kx, (B, D_IN), jnp.float32)
    w1, b1, w2, b2, w3, b3 = init_params(key)

    slab = pack_params(w1, b1, w2, b2, w3, b3)      # pack once, outside the call path
    fwd = jax.jit(mlp_forward, static_argnames=("tile_b",))

    out = jax.block_until_ready(fwd(x, slab))
    ref = reference_forward(x, w1, b1, w2, b2, w3, b3)

    assert out.shape == (B, 1)
    # bf16 matmul operands with f32 accumulation vs an f32 reference -> ~1e-3 agreement.
    assert jnp.allclose(out, ref, atol=5e-3, rtol=5e-3)
    print("KERNEL_OK")
</pallas_src>

<mosaic_0001>
module attributes {stable_mosaic.version = 11 : i64} {
  func.func @mlp_kernel(%arg0: i32, %arg1: memref<16x128xbf16, #tpu.memory_space<vmem>>, %arg2: memref<48x35xbf16, #tpu.memory_space<vmem>>, %arg3: memref<1x128xf32, #tpu.memory_space<vmem>>) attributes {dimension_semantics = [#tpu.dimension_semantics<parallel>], iteration_bounds = array<i64: 1>, scalar_prefetch = 0 : i64, scratch_operands = 0 : i64, tpu.core_type = #tpu.core_type<tc>, window_params = [{transform_indices = @transform_0, window_bounds = array<i64: 16, 128>}, {pipeline_mode = #tpu.pipeline_mode<synchronous>, transform_indices = @transform_1, window_bounds = array<i64: 48, 35>}, {transform_indices = @transform_2, window_bounds = array<i64: 1, 128>}]} {
    %c0 = arith.constant 0 : index
    %c0_0 = arith.constant 0 : index
    %0 = vector.load %arg1[%c0, %c0_0] : memref<16x128xbf16, #tpu.memory_space<vmem>>, vector<16x128xbf16>
    %c0_1 = arith.constant 0 : index
    %c0_2 = arith.constant 0 : index
    %1 = vector.load %arg2[%c0_1, %c0_2] : memref<48x35xbf16, #tpu.memory_space<vmem>>, vector<32x16xbf16>
    %cst = arith.constant dense<0.000000e+00> : vector<32x128xf32>
    %2 = tpu.matmul %1, %0, %cst {dimension_numbers = #tpu.dot_dimension_numbers<[1], [0], [0], [1], [0, 0, 1, 1], [], []>} : vector<32x16xbf16>, vector<16x128xbf16>, vector<32x128xf32> -> vector<32x128xf32>
    %cst_3 = arith.constant 0.000000e+00 : f32
    %3 = vector.broadcast %cst_3 : f32 to vector<32x128xf32>
    %4 = arith.maximumf %2, %3 : vector<32x128xf32>
    %c32 = arith.constant 32 : index
    %c0_4 = arith.constant 0 : index
    %5 = vector.load %arg2[%c32, %c0_4] : memref<48x35xbf16, #tpu.memory_space<vmem>>, vector<16x32xbf16>
    %c32_5 = arith.constant 32 : index
    %c32_6 = arith.constant 32 : index
    %6 = vector.load %arg2[%c32_5, %c32_6] : memref<48x35xbf16, #tpu.memory_space<vmem>>, vector<16x1xbf16>
    %7 = arith.extf %6 : vector<16x1xbf16> to vector<16x1xf32>
    %8 = arith.truncf %4 : vector<32x128xf32> to vector<32x128xbf16>
    %cst_7 = arith.constant dense<0.000000e+00> : vector<16x128xf32>
    %9 = tpu.matmul %5, %8, %cst_7 {dimension_numbers = #tpu.dot_dimension_numbers<[1], [0], [0], [1], [0, 0, 1, 1], [], []>} : vector<16x32xbf16>, vector<32x128xbf16>, vector<16x128xf32> -> vector<16x128xf32>
    %10 = vector.broadcast %7 : vector<16x1xf32> to vector<16x128xf32>
    %11 = arith.addf %9, %10 : vector<16x128xf32>
    %cst_8 = arith.constant 0.000000e+00 : f32
    %12 = vector.broadcast %cst_8 : f32 to vector<16x128xf32>
    %13 = arith.maximumf %11, %12 : vector<16x128xf32>
    %c32_9 = arith.constant 32 : index
    %c33 = arith.constant 33 : index
    %14 = vector.load %arg2[%c32_9, %c33] : memref<48x35xbf16, #tpu.memory_space<vmem>>, vector<16x1xbf16>
    %15 = arith.extf %14 : vector<16x1xbf16> to vector<16x1xf32>
    %c32_10 = arith.constant 32 : index
    %c34 = arith.constant 34 : index
    %16 = vector.load %arg2[%c32_10, %c34] : memref<48x35xbf16, #tpu.memory_space<vmem>>, vector<1x1xbf16>
    %17 = arith.extf %16 : vector<1x1xbf16> to vector<1x1xf32>
    %18 = vector.broadcast %15 : vector<16x1xf32> to vector<16x128xf32>
    %19 = arith.mulf %18, %13 : vector<16x128xf32>
    %cst_11 = arith.constant dense<0.000000e+00> : vector<128xf32>
    %20 = vector.multi_reduction <add>, %19, %cst_11 [0] : vector<16x128xf32> to vector<128xf32>
    %21 = vector.shape_cast %20 : vector<128xf32> to vector<1x128xf32>
    %22 = vector.broadcast %17 : vector<1x1xf32> to vector<1x128xf32>
    %23 = arith.addf %21, %22 : vector<1x128xf32>
    %cst_12 = arith.constant 0.000000e+00 : f32
    %24 = vector.broadcast %cst_12 : f32 to vector<1x128xf32>
    %25 = arith.maximumf %23, %24 : vector<1x128xf32>
    %cst_13 = arith.constant 0.000000e+00 : f32
    %26 = vector.broadcast %cst_13 : f32 to vector<1x128xf32>
    %27 = arith.subf %26, %25 : vector<1x128xf32>
    %28 = math.exp %27 : vector<1x128xf32>
    %cst_14 = arith.constant 1.000000e+00 : f32
    %29 = vector.broadcast %cst_14 : f32 to vector<1x128xf32>
    %30 = arith.addf %29, %28 : vector<1x128xf32>
    %cst_15 = arith.constant 1.000000e+00 : f32
    %31 = vector.broadcast %cst_15 : f32 to vector<1x128xf32>
    %32 = arith.divf %31, %30 : vector<1x128xf32>
    %c0_16 = arith.constant 0 : index
    %c0_17 = arith.constant 0 : index
    %33 = vector.load %arg3[%c0_16, %c0_17] : memref<1x128xf32, #tpu.memory_space<vmem>>, vector<1x128xf32>
    tpu.vector_store %arg3[%c0_16, %c0_17], %32 {strides = array<i32>} : memref<1x128xf32, #tpu.memory_space<vmem>>, vector<1x128xf32>,
    return
  }
  func.func @transform_0(%arg0: i32) -> (i32, i32) {
    %c0_i32 = arith.constant 0 : i32
    %c0_i32_0 = arith.constant 0 : i32
    return %c0_i32, %arg0 : i32, i32
  }
  func.func @transform_1(%arg0: i32) -> (i32, i32) {
    %c0_i32 = arith.constant 0 : i32
    %c0_i32_0 = arith.constant 0 : i32
    %c0_i32_1 = arith.constant 0 : i32
    return %c0_i32, %c0_i32_0 : i32, i32
  }
  func.func @transform_2(%arg0: i32) -> (i32, i32) {
    %c0_i32 = arith.constant 0 : i32
    %c0_i32_0 = arith.constant 0 : i32
    return %c0_i32, %arg0 : i32, i32
  }
}

</mosaic_0001>

<llo_original>
// kernel: mlp_forward.1
$region0: #{mlp_forward.1}
  #allocation0 [shape = 'u32[]', space=smem, size = 0x4, offset = 0x4, fixed_abs, tag = 'smem constant byte address 0x4 - core index']
  #allocation1 [shape = 'u32[144,128]{1,0:T(1,128)}', space=vmem, size = 0x12000, scoped, tag = 'internal scratch']
  %s0 = inlined_call_operand.vmem [shape: bf16[16,128], index: 0, kind: input, shape index: {}]
  %s1 = inlined_call_operand.vmem [shape: bf16[48,35], index: 1, kind: input, shape index: {}]
  %s2 = inlined_call_operand.vmem [shape: f32[1,128], index: 2, kind: output, shape index: {}]
  %s3 = sld [smem:[#allocation0]]
  $region18: #{mlp_forward.1} parent=0
    _
  %s5 = ssub.s32 1, %s3
  %s6 = scalar_select 0, %s5, %s3
  // Predicated region
  $region2: #{mlp_forward.1} parent=0 // pred_check
    _
  $region3: #{mlp_forward.1} parent=0 // pred_check_branch
    %8 = sbr.rel (0) target = $region5
  $region4: #{mlp_forward.1} parent=0 // pred_region
    _
  $region5: #{mlp_forward.1} parent=0 // pred_fallthru
    _
  // Predicated region
  $region6: #{mlp_forward.1} parent=0 // pred_check
    _
  $region7: #{mlp_forward.1} parent=0 // pred_check_branch
    %10 = sbr.rel (0) target = $region9
  $region8: #{mlp_forward.1} parent=0 // pred_region
    _
  $region9: #{mlp_forward.1} parent=0 // pred_fallthru
    _
  %v12 = vld [vmem:[%s0] sm:$0xf]
  %v13 = vld [vmem:[%s0 + $0x4] sm:$0xf]
  %v14 = vld [vmem:[%s1] sm:$0xf]
  %v15 = vld [vmem:[%s1 + $0x4] sm:$0xf]
  %v16 = vld [vmem:[%s1 + $0x8] sm:$0xf]
  %v17 = vld [vmem:[%s1 + $0xc] sm:$0xf]
  %v22 = vunpack.c.l.b16 %v14
  %v23 = vunpack.c.l.b16 %v15
  %v24 = vunpack.c.l.b16 %v16
  %v25 = vunpack.c.l.b16 %v17
  %v26 = vpack.c.b16 %v23, %v22
  %v27 = vpack.c.b16 %v25, %v24
  %v30 = vunpack.c.l.b16 %v12
  %v31 = vunpack.c.l.b16 %v13
  %v32 = vpack.c.b16 %v31, %v30
  %vm34 = vcmask 130048
  %v36 = vsel %vm34, %v26, 0
  %v39 = vsel %vm34, %v27, 0
  %41 = vmatprep.subr.bf16.mxu0 0
  %42 = vmatpush1.bf16.msra.mxu0 %v32
  %43 = vmatprep.subr.bf16.mxu0 0
  %44 = vmatpush1.bf16.msra.mxu0 0
  %45 = vmatprep.subr.bf16.mxu0 0
  %46 = vmatpush1.bf16.msra.mxu0 0
  %47 = vmatprep.subr.bf16.mxu0 0
  %48 = vmatpush1.bf16.msra.mxu0 0
  %49 = vmatprep.subr.bf16.mxu0 0
  %50 = vmatpush1.bf16.msra.mxu0 0
  %51 = vmatprep.subr.bf16.mxu0 0
  %52 = vmatpush1.bf16.msra.mxu0 0
  %53 = vmatprep.subr.bf16.mxu0 0
  %54 = vmatpush1.bf16.msra.mxu0 0
  %55 = vmatprep.subr.bf16.mxu0 0
  %56 = vmatpush1.bf16.msra.mxu0 0
  %57 = vmatprep.subr.bf16.mxu0 0
  %58 = vmatpush1.bf16.msra.mxu0 0
  %59 = vmatprep.subr.bf16.mxu0 0
  %60 = vmatpush1.bf16.msra.mxu0 0
  %61 = vmatprep.subr.bf16.mxu0 0
  %62 = vmatpush1.bf16.msra.mxu0 0
  %63 = vmatprep.subr.bf16.mxu0 0
  %64 = vmatpush1.bf16.msra.mxu0 0
  %65 = vmatprep.subr.bf16.mxu0 0
  %66 = vmatpush1.bf16.msra.mxu0 0
  %67 = vmatprep.subr.bf16.mxu0 0
  %68 = vmatpush1.bf16.msra.mxu0 0
  %69 = vmatprep.subr.bf16.mxu0 0
  %70 = vmatpush1.bf16.msra.mxu0 0
  %71 = vmatprep.subr.bf16.mxu0 0
  %72 = vmatpush1.bf16.msra.mxu0 0
  %73 = vmatprep.mubr.bf16.mxu0 0
  %74 = vmatmul.mubr.bf16.gmra.mrb[0].mxu0 %v36
  %v75 = vpop.f32.mrb[0].mxu0
  %v76 = vadd.f32 0.0, %v75
  %v77 = vpop.f32.mrb[0].mxu0
  %v78 = vpop.f32.mrb[0].mxu0
  %v79 = vadd.f32 0.0, %v78
  %v80 = vpop.f32.mrb[0].mxu0
  %81 = vmatprep.mubr.bf16.mxu0 0
  %82 = vmatmul.mubr.bf16.gmra.mrb[0].mxu0 %v39
  %v83 = vpop.f32.mrb[0].mxu0
  %v84 = vadd.f32 0.0, %v83
  %v85 = vpop.f32.mrb[0].mxu0
  %v86 = vpop.f32.mrb[0].mxu0
  %v87 = vadd.f32 0.0, %v86
  %v88 = vpop.f32.mrb[0].mxu0
  %89 = vdwg.mxu0
  %v90 = vmax.f32 %v76, 0.0
  %v91 = vmax.f32 %v79, 0.0
  %v92 = vmax.f32 %v84, 0.0
  %v93 = vmax.f32 %v87, 0.0
  %v94 = vld [vmem:[%s1 + $0x10] sm:$0xf]
  %v95 = vld [vmem:[%s1 + $0x14] sm:$0xf]
  %v96 = vunpack.c.l.bf16 %v94
  %v97 = vunpack.c.l.bf16 %v95
  %v98 = vpack.c.bf16 %v91, %v90
  %v99 = vpack.c.bf16 %v93, %v92
  %101 = vset.pattern.permute.xlu0 32
  %102 = vperm.xlu0 %101, %v96
  %v103 = vpop.permute.xlu0 %102
  %106 = vset.pattern.permute.xlu0 32
  %107 = vperm.xlu0 %106, %v97
  %v108 = vpop.permute.xlu0 %107
  %v112 = vunpack.c.l.b16 %v94
  %v113 = vunpack.c.l.b16 %v95
  %v114 = vpack.c.b16 %v113, %v112
  %vm115 = vcmask 261120
  %v117 = vsel %vm115, %v114, 0
  %119 = vmatprep.subr.bf16.mxu0 0
  %120 = vmatpush1.bf16.msra.mxu0 %v98
  %121 = vmatprep.subr.bf16.mxu0 0
  %122 = vmatpush1.bf16.msra.mxu0 %v99
  %123 = vmatprep.subr.bf16.mxu0 0
  %124 = vmatpush1.bf16.msra.mxu0 0
  %125 = vmatprep.subr.bf16.mxu0 0
  %126 = vmatpush1.bf16.msra.mxu0 0
  %127 = vmatprep.subr.bf16.mxu0 0
  %128 = vmatpush1.bf16.msra.mxu0 0
  %129 = vmatprep.subr.bf16.mxu0 0
  %130 = vmatpush1.bf16.msra.mxu0 0
  %131 = vmatprep.subr.bf16.mxu0 0
  %132 = vmatpush1.bf16.msra.mxu0 0
  %133 = vmatprep.subr.bf16.mxu0 0
  %134 = vmatpush1.bf16.msra.mxu0 0
  %135 = vmatprep.subr.bf16.mxu0 0
  %136 = vmatpush1.bf16.msra.mxu0 0
  %137 = vmatprep.subr.bf16.mxu0 0
  %138 = vmatpush1.bf16.msra.mxu0 0
  %139 = vmatprep.subr.bf16.mxu0 0
  %140 = vmatpush1.bf16.msra.mxu0 0
  %141 = vmatprep.subr.bf16.mxu0 0
  %142 = vmatpush1.bf16.msra.mxu0 0
  %143 = vmatprep.subr.bf16.mxu0 0
  %144 = vmatpush1.bf16.msra.mxu0 0
  %145 = vmatprep.subr.bf16.mxu0 0
  %146 = vmatpush1.bf16.msra.mxu0 0
  %147 = vmatprep.subr.bf16.mxu0 0
  %148 = vmatpush1.bf16.msra.mxu0 0
  %149 = vmatprep.subr.bf16.mxu0 0
  %150 = vmatpush1.bf16.msra.mxu0 0
  %151 = vmatprep.mubr.bf16.mxu0 0
  %152 = vmatmul.mubr.bf16.gmra.mrb[0].mxu0 %v117
  %v153 = vpop.f32.mrb[0].mxu0
  %v154 = vadd.f32 %v103, %v153
  %v155 = vpop.f32.mrb[0].mxu0
  %v156 = vpop.f32.mrb[0].mxu0
  %v157 = vadd.f32 %v108, %v156
  %v158 = vpop.f32.mrb[0].mxu0
  %159 = vdwg.mxu0
  %v160 = vmax.f32 %v154, 0.0
  %v161 = vmax.f32 %v157, 0.0
  %v162 = vld [vmem:[%s1 + $0x10] sm:$0x1]
  %v163 = vunpack.c.l.bf16 %v162
  %164 = vset.pattern.permute.xlu0 33
  %165 = vperm.xlu0 %164, %v96
  %v166 = vpop.permute.xlu0 %165
  %168 = vset.pattern.permute.xlu0 33
  %169 = vperm.xlu0 %168, %v97
  %v170 = vpop.permute.xlu0 %169
  %v172 = vmul.f32 %v166, %v160
  %v173 = vmul.f32 %v170, %v161
  %v174 = vadd.f32 %v172, %v173
  %v175 = vrot.slane %v174, 4
  %v176 = vadd.f32 %v174, %v175
  %v177 = vrot.slane %v176, 2
  %v178 = vadd.f32 %v176, %v177
  %v179 = vrot.slane %v178, 1
  %v180 = vadd.f32 %v178, %v179
  %182 = vset.pattern.permute.xlu0 34
  %183 = vperm.xlu0 %182, %v163
  %v184 = vpop.permute.xlu0 %183
  %v186 = vadd.f32 %v180, %v184
  %v187 = vmax.f32 %v186, 0.0
  %v188 = vsub.f32 0.0, %v187
  %v189 = vmul.f32 %v188, 1.442695
  %v190 = vpow.pop %v189
  %v191 = vadd.f32 %v190, 1.0
  %v192 = vrcp.pop %v191
  %v193 = vmul.f32 1.0, %v192
  %194 = vst [vmem:[%s2] sm:$0x1] %v193
  // Predicated region
  $region10: #{mlp_forward.1} parent=0 // pred_check
    _
  $region11: #{mlp_forward.1} parent=0 // pred_check_branch
    %196 = sbr.rel (0) target = $region13
  $region12: #{mlp_forward.1} parent=0 // pred_region
    _
  $region13: #{mlp_forward.1} parent=0 // pred_fallthru
    _
  // Predicated region
  $region14: #{mlp_forward.1} parent=0 // pred_check
    _
  $region15: #{mlp_forward.1} parent=0 // pred_check_branch
    %198 = sbr.rel (0) target = $region17
  $region16: #{mlp_forward.1} parent=0 // pred_region
    _
  $region17: #{mlp_forward.1} parent=0 // pred_fallthru
    _

</llo_original>
